<compile_context>
chip_gen: v5e
topology: v5e:2x2
jax: 0.10.0
libtpu: 0.0.40
codegen_flags: <defaults>
</compile_context>

<pallas_src>
import functools
import math

import jax
import jax.numpy as jnp
from jax.experimental import pallas as pl
from jax.experimental.pallas import tpu as pltpu

_VMEM_LIMIT = 32 * 1024 * 1024          # explicit: v5e scoped default is only 16 MiB
_BIG_BUDGET = 24 * 1024 * 1024          # double-buffered footprint target for streamed arrays


# ----------------------------- kernels --------------------------------------

def _add2_kernel(x_ref, y_ref, o_ref):
    # dtype promotion in-kernel (free on the VPU); jnp broadcasting handles
    # blocks like (bn,C,H,W) + (1,C,1,1) in the bias path.
    o_ref[...] = x_ref[...].astype(o_ref.dtype) + y_ref[...].astype(o_ref.dtype)


def _add_tiny_kernel(x_ref, y_ref, o_ref):
    # y_ref is a (1,1) operand (size-1 tensor); broadcast across the tile.
    o_ref[...] = x_ref[...].astype(o_ref.dtype) + y_ref[0, 0].astype(o_ref.dtype)


def _add_alpha_kernel(alpha, x_ref, o_ref):
    # alpha is a static module argument -> baked as a compile-time constant.
    o_ref[...] = (x_ref[...].astype(o_ref.dtype) + alpha).astype(o_ref.dtype)


# ----------------------------- pallas_call helpers ---------------------------

def _call_2d(kernel, mats, tinies, out_dtype, full_shape, block, grid):
    in_specs = [pl.BlockSpec(block, lambda i: (i, 0)) for _ in mats]
    in_specs += [pl.BlockSpec((1, 1), lambda i: (0, 0)) for _ in tinies]
    return pl.pallas_call(
        kernel,
        out_shape=jax.ShapeDtypeStruct(full_shape, out_dtype),
        grid_spec=pltpu.PrefetchScalarGridSpec(
            num_scalar_prefetch=0,
            grid=grid,
            in_specs=in_specs,
            out_specs=pl.BlockSpec(block, lambda i: (i, 0)),
        ),
        compiler_params=pltpu.CompilerParams(
            dimension_semantics=("parallel",),
            vmem_limit_bytes=_VMEM_LIMIT,
        ),
    )(*mats, *tinies)


def _stream_pallas(kernel, bigs, tinies, out_dtype, out_shape):
    """Stream same-shape `bigs` through a lane-dense 2-D view. `tinies` are (1,1) operands."""
    total = int(bigs[0].size)
    if total == 0:
        return jnp.zeros(out_shape, out_dtype)

    itemsize = max([jnp.dtype(a.dtype).itemsize for a in bigs]
                   + [jnp.dtype(out_dtype).itemsize])
    n_big = len(bigs) + 1                               # streamed inputs + output
    tile_bytes = _BIG_BUDGET // (2 * n_big)             # per-buffer tile budget

    lanes = None
    for cand in (512, 256, 128):                        # adaptive lane width: avoid jnp.pad
        if total % cand == 0:
            lanes = cand
            break

    padded = False
    if lanes is None:
        if total * itemsize <= tile_bytes:
            # Whole array in one block -> no pad / slice copies for ragged sizes.
            mats = [a.reshape(1, total) for a in bigs]
            out = _call_2d(kernel, mats, tinies, out_dtype, (1, total),
                           block=(1, total), grid=(1,))
            return out.reshape(out_shape)
        # TODO(synk): large sizes not divisible by 128 fall back to pad + tail slice
        # (two extra HBM passes); a masked final tile would remove them.
        pad = (-total) % 128
        lanes = 128
        mats = [jnp.pad(a.reshape(-1), (0, pad)).reshape(-1, lanes) for a in bigs]
        padded = True
    else:
        mats = [a.reshape(-1, lanes) for a in bigs]     # free reshape, no copy

    R = mats[0].shape[0]
    max_tm = max(8, (tile_bytes // (lanes * itemsize)) // 8 * 8)

    if R <= max_tm:
        tm = R
        # Guarantee >=2 grid steps for mid/large tensors: v7x has 2 TensorCores
        # and a single-step grid also forfeits DMA/compute overlap.
        if R >= 16 and R * lanes * itemsize > 2 * 1024 * 1024:
            tm = min(max_tm, ((R + 1) // 2 + 7) // 8 * 8)
    else:
        tm = max_tm

    out_mat = _call_2d(kernel, mats, tinies, out_dtype, (R, lanes),
                       block=(tm, lanes), grid=(pl.cdiv(R, tm),))
    out_flat = out_mat.reshape(-1)
    if padded:
        out_flat = out_flat[:total]
    return out_flat.reshape(out_shape)


# ----------------------------- in-kernel broadcast path ----------------------

def _bcast_feasible(big, small, out_dtype):
    """Can we add `small` (un-broadcast) to `big` by blocking big's leading dim only?"""
    nd = big.ndim
    if nd < 3:
        return False
    s = (1,) * (nd - small.ndim) + tuple(small.shape)
    if len(s) != nd or s[0] != 1:
        return False
    itemsize = max(jnp.dtype(big.dtype).itemsize, jnp.dtype(out_dtype).itemsize)
    row_bytes = math.prod(big.shape[1:]) * itemsize
    small_bytes = small.size * jnp.dtype(small.dtype).itemsize
    return row_bytes <= 5 * 1024 * 1024 and small_bytes <= 2 * 1024 * 1024


def _bcast_add(x, y, out_dtype):
    """x + y where y broadcasts against x (out shape == x.shape, y's leading dim is 1)."""
    nd = x.ndim
    y = y.reshape((1,) * (nd - y.ndim) + tuple(y.shape))
    N = x.shape[0]
    row_elems = math.prod(x.shape[1:])
    itemsize = max(jnp.dtype(x.dtype).itemsize, jnp.dtype(y.dtype).itemsize,
                   jnp.dtype(out_dtype).itemsize)
    bn = max(1, min(N, (5 * 1024 * 1024) // max(1, row_elems * itemsize)))

    x_block = (bn,) + tuple(x.shape[1:])
    x_map = lambda i: (i,) + (0,) * (nd - 1)
    y_map = lambda i: (0,) * nd                     # small operand stays resident in VMEM

    return pl.pallas_call(
        _add2_kernel,
        out_shape=jax.ShapeDtypeStruct(x.shape, out_dtype),
        grid_spec=pltpu.PrefetchScalarGridSpec(
            num_scalar_prefetch=0,
            grid=(pl.cdiv(N, bn),),
            in_specs=[pl.BlockSpec(x_block, x_map),
                      pl.BlockSpec(tuple(y.shape), y_map)],
            out_specs=pl.BlockSpec(x_block, x_map),
        ),
        compiler_params=pltpu.CompilerParams(
            dimension_semantics=("parallel",),
            vmem_limit_bytes=_VMEM_LIMIT,
        ),
    )(x, y)


# ----------------------------- module forward --------------------------------

def addition(x, y=None, alpha=None):
    """Forward pass of the Addition module: x + y, or x + alpha if y is None."""
    x = jnp.asarray(x)
    if y is not None:
        y = jnp.asarray(y)
        out_dtype = jnp.result_type(x.dtype, y.dtype)
        out_shape = jnp.broadcast_shapes(x.shape, y.shape)

        if x.shape == y.shape:
            return _stream_pallas(_add2_kernel, [x, y], [], out_dtype, out_shape)
        if y.size == 1 and out_shape == x.shape:
            return _stream_pallas(_add_tiny_kernel, [x], [y.reshape(1, 1)],
                                  out_dtype, out_shape)
        if x.size == 1 and out_shape == y.shape:
            return _stream_pallas(_add_tiny_kernel, [y], [x.reshape(1, 1)],
                                  out_dtype, out_shape)
        if out_shape == x.shape and _bcast_feasible(x, y, out_dtype):
            return _bcast_add(x, y, out_dtype)
        if out_shape == y.shape and _bcast_feasible(y, x, out_dtype):
            return _bcast_add(y, x, out_dtype)
        # TODO(synk): uncommon broadcast patterns fall back to a materialized broadcast.
        xb, yb = jnp.broadcast_arrays(x, y)
        return _stream_pallas(_add2_kernel, [xb, yb], [], out_dtype, out_shape)

    elif alpha is not None:
        if isinstance(alpha, (bool, int, float)):
            # static module argument -> compile-time constant, zero operand traffic
            out_dtype = jnp.result_type(x.dtype, alpha)
            kern = functools.partial(_add_alpha_kernel, alpha)
            return _stream_pallas(kern, [x], [], out_dtype, x.shape)
        # traced / array alpha: pass as a tiny (1,1) operand to avoid per-value recompiles
        a = jnp.asarray(alpha)
        out_dtype = jnp.result_type(x.dtype, a.dtype)
        return _stream_pallas(_add_tiny_kernel, [x], [a.reshape(1, 1)],
                              out_dtype, x.shape)
    else:
        raise ValueError(
            "Must provide a second tensor or a scalar alpha for the addition.")


# ----------------------------- demo / self-test ------------------------------

if __name__ == "__main__":
    key = jax.random.PRNGKey(0)
    kx, ky, kb, kz = jax.random.split(key, 4)

    # Small NCHW feature maps consistent with the module's typical usage.
    x = jax.random.normal(kx, (2, 4, 16, 16), dtype=jnp.float32)
    y = jax.random.normal(ky, (2, 4, 16, 16), dtype=jnp.float32)

    # 1) tensor + tensor (same shape)
    out_xy = jax.block_until_ready(addition(x, y))
    assert out_xy.shape == x.shape
    assert jnp.allclose(out_xy, x + y, atol=1e-6, rtol=1e-6), "x+y mismatch"

    # 2) tensor + static scalar alpha
    out_xa = jax.block_until_ready(addition(x, alpha=0.5))
    assert out_xa.shape == x.shape
    assert jnp.allclose(out_xa, x + 0.5, atol=1e-6, rtol=1e-6), "x+alpha mismatch"

    # 3) mixed dtype (promotion happens inside the kernel)
    y_bf16 = y.astype(jnp.bfloat16)
    out_mix = jax.block_until_ready(addition(x, y_bf16))
    assert out_mix.dtype == jnp.float32
    assert jnp.allclose(out_mix, x + y_bf16, atol=1e-6, rtol=1e-6), "mixed dtype mismatch"

    # 4) channel-bias broadcast ((C,1,1) added un-materialized inside the kernel)
    bias = jax.random.normal(kb, (4, 1, 1), dtype=jnp.float32)
    out_bias = jax.block_until_ready(addition(x, bias))
    assert out_bias.shape == x.shape
    assert jnp.allclose(out_bias, x + bias, atol=1e-6, rtol=1e-6), "bias broadcast mismatch"

    # 5) ragged / non-128-divisible size (single whole-array block, no pad copy)
    z = jax.random.normal(kz, (3, 5, 7), dtype=jnp.float32)
    out_z = jax.block_until_ready(addition(z, alpha=2.0))
    assert out_z.shape == z.shape
    assert jnp.allclose(out_z, z + 2.0, atol=1e-6, rtol=1e-6), "ragged mismatch"

    print("KERNEL_OK")
</pallas_src>

<mosaic_0001>
module attributes {stable_mosaic.version = 11 : i64} {
  func.func @_add2_kernel(%arg0: i32, %arg1: memref<4x512xf32, #tpu.memory_space<vmem>>, %arg2: memref<4x512xf32, #tpu.memory_space<vmem>>, %arg3: memref<4x512xf32, #tpu.memory_space<vmem>>) attributes {dimension_semantics = [#tpu.dimension_semantics<parallel>], iteration_bounds = array<i64: 1>, scalar_prefetch = 0 : i64, scratch_operands = 0 : i64, tpu.core_type = #tpu.core_type<tc>, window_params = [{transform_indices = @transform_0, window_bounds = array<i64: 4, 512>}, {transform_indices = @transform_1, window_bounds = array<i64: 4, 512>}, {transform_indices = @transform_2, window_bounds = array<i64: 4, 512>}]} {
    %c0 = arith.constant 0 : index
    %c0_0 = arith.constant 0 : index
    %0 = vector.load %arg1[%c0, %c0_0] : memref<4x512xf32, #tpu.memory_space<vmem>>, vector<4x512xf32>
    %c0_1 = arith.constant 0 : index
    %c0_2 = arith.constant 0 : index
    %1 = vector.load %arg2[%c0_1, %c0_2] : memref<4x512xf32, #tpu.memory_space<vmem>>, vector<4x512xf32>
    %2 = arith.addf %0, %1 : vector<4x512xf32>
    %c0_3 = arith.constant 0 : index
    %c0_4 = arith.constant 0 : index
    %3 = vector.load %arg3[%c0_3, %c0_4] : memref<4x512xf32, #tpu.memory_space<vmem>>, vector<4x512xf32>
    tpu.vector_store %arg3[%c0_3, %c0_4], %2 {strides = array<i32>} : memref<4x512xf32, #tpu.memory_space<vmem>>, vector<4x512xf32>,
    return
  }
  func.func @transform_0(%arg0: i32) -> (i32, i32) {
    %c0_i32 = arith.constant 0 : i32
    %c0_i32_0 = arith.constant 0 : i32
    return %arg0, %c0_i32 : i32, i32
  }
  func.func @transform_1(%arg0: i32) -> (i32, i32) {
    %c0_i32 = arith.constant 0 : i32
    %c0_i32_0 = arith.constant 0 : i32
    return %arg0, %c0_i32 : i32, i32
  }
  func.func @transform_2(%arg0: i32) -> (i32, i32) {
    %c0_i32 = arith.constant 0 : i32
    %c0_i32_0 = arith.constant 0 : i32
    return %arg0, %c0_i32 : i32, i32
  }
}

</mosaic_0001>

<llo_original>
// kernel: tpu_custom_call.1
$region0: #{tpu_custom_call.1}
  #allocation0 [shape = 'u32[]', space=smem, size = 0x4, offset = 0x4, fixed_abs, tag = 'smem constant byte address 0x4 - core index']
  #allocation1 [shape = 'u32[72,128]{1,0:T(1,128)}', space=vmem, size = 0x9000, scoped, tag = 'internal scratch']
  %s0 = inlined_call_operand.hbm [shape: f32[4,512], index: 0, kind: input, shape index: {}]
  %s1 = inlined_call_operand.hbm [shape: f32[4,512], index: 1, kind: input, shape index: {}]
  %s2 = inlined_call_operand.hbm [shape: f32[4,512], index: 2, kind: output, shape index: {}]
  %s3 = sld [smem:[#allocation0]]
  $region26: #{tpu_custom_call.1} parent=0
    _
  %s5 = ssub.s32 1, %s3
  %s6 = scalar_select 0, %s5, %s3
  $region1: #{tpu_custom_call.1} parent=0
    #allocation2 [shape = 'u8[8192]{0}', space=vmem, size = 0x2000, scoped, tag = 'input window, operand 0, single buffered']
    #allocation3 [shape = 's32[1]{0}', space=sflag, size = 0x4, scoped, tag = 'scoped memory for tpu_custom_call.1']
    #allocation4 [shape = 's32[1]{0}', space=sflag, size = 0x4, scoped, tag = 'scoped memory for tpu_custom_call.1']
    #allocation5 [shape = 'u8[8192]{0}', space=vmem, size = 0x2000, scoped, tag = 'input window, operand 1, single buffered']
    #allocation6 [shape = 's32[1]{0}', space=sflag, size = 0x4, scoped, tag = 'scoped memory for tpu_custom_call.1']
    #allocation7 [shape = 'u8[8192]{0}', space=vmem, size = 0x2000, scoped, tag = 'output window, operand 0, single buffered']
    %7 = vsyncpa [#allocation3], 0
    %8 = vsyncpa [#allocation6], 0
    %9 = vsyncpa [#allocation4], 0
    // Predicated region
    $region2: #{tpu_custom_call.1} parent=1 // pred_check
      _
    $region3: #{tpu_custom_call.1} parent=1 // pred_check_branch
      %11 = sbr.rel (0) target = $region5
    $region4: #{tpu_custom_call.1} parent=1 // pred_region
      %13 = vsyncadd [#allocation3], 0
      %s15 = sshll.u32 %s0, 4
      %s16 = int_to_ptr.hbm [resolvable:$true] %s15
      %s17 = sshll.u32 [#allocation2], 4
      %s18 = int_to_ptr.vmem [resolvable:$true] %s17
      %20 = dma.hbm_to_vmem [thread:$0]  %s16, 256, %s18, [#allocation3]
    $region5: #{tpu_custom_call.1} parent=1 // pred_fallthru
      _
    // Predicated region
    $region6: #{tpu_custom_call.1} parent=1 // pred_check
      _
    $region7: #{tpu_custom_call.1} parent=1 // pred_check_branch
      %22 = sbr.rel (0) target = $region9
    $region8: #{tpu_custom_call.1} parent=1 // pred_region
      %24 = vsyncadd [#allocation6], 0
      %s26 = sshll.u32 %s1, 4
      %s27 = int_to_ptr.hbm [resolvable:$true] %s26
      %s28 = sshll.u32 [#allocation5], 4
      %s29 = int_to_ptr.vmem [resolvable:$true] %s28
      %31 = dma.hbm_to_vmem [thread:$0]  %s27, 256, %s29, [#allocation6]
    $region9: #{tpu_custom_call.1} parent=1 // pred_fallthru
      _
    // Predicated region
    $region10: #{tpu_custom_call.1} parent=1 // pred_check
      _
    $region11: #{tpu_custom_call.1} parent=1 // pred_check_branch
      %33 = sbr.rel (0) target = $region13
    $region12: #{tpu_custom_call.1} parent=1 // pred_region
      %35 = dma.done [#allocation3], 256
    $region13: #{tpu_custom_call.1} parent=1 // pred_fallthru
      _
    // Predicated region
    $region14: #{tpu_custom_call.1} parent=1 // pred_check
      _
    $region15: #{tpu_custom_call.1} parent=1 // pred_check_branch
      %37 = sbr.rel (0) target = $region17
    $region16: #{tpu_custom_call.1} parent=1 // pred_region
      %39 = dma.done [#allocation6], 256
    $region17: #{tpu_custom_call.1} parent=1 // pred_fallthru
      _
    %v40 = vld [vmem:[#allocation2] sm:$0xff]
    %v41 = vld [vmem:[#allocation2 + $0x8] sm:$0xff]
    %v42 = vld [vmem:[#allocation5] sm:$0xff]
    %v43 = vld [vmem:[#allocation5 + $0x8] sm:$0xff]
    %v44 = vadd.f32 %v40, %v42
    %v45 = vadd.f32 %v41, %v43
    %46 = vst [vmem:[#allocation7] sm:$0xff] %v44
    %47 = vst [vmem:[#allocation7 + $0x8] sm:$0xff] %v45
    // Predicated region
    $region18: #{tpu_custom_call.1} parent=1 // pred_check
      _
    $region19: #{tpu_custom_call.1} parent=1 // pred_check_branch
      %49 = sbr.rel (0) target = $region21
    $region20: #{tpu_custom_call.1} parent=1 // pred_region
      %51 = vsyncadd [#allocation4], 0
      %s53 = sshll.u32 [#allocation7], 4
      %s54 = int_to_ptr.vmem [resolvable:$true] %s53
      %s55 = sshll.u32 %s2, 4
      %s56 = int_to_ptr.hbm [resolvable:$true] %s55
      %58 = dma.vmem_to_hbm [thread:$0]  %s54, 256, %s56, [#allocation4]
    $region21: #{tpu_custom_call.1} parent=1 // pred_fallthru
      _
    // Predicated region
    $region22: #{tpu_custom_call.1} parent=1 // pred_check
      _
    $region23: #{tpu_custom_call.1} parent=1 // pred_check_branch
      %60 = sbr.rel (0) target = $region25
    $region24: #{tpu_custom_call.1} parent=1 // pred_region
      %62 = dma.done [#allocation4], 256
    $region25: #{tpu_custom_call.1} parent=1 // pred_fallthru
      _
    %63 = vsyncpa [#allocation3], 1
    %64 = vsyncpa [#allocation6], 1
    %65 = vsyncpa [#allocation4], 1

</llo_original>
